<compile_context>
chip_gen: v7x
topology: tpu7x:2x2x1
jax: 0.10.0
libtpu: 0.0.40
codegen_flags: <defaults>
</compile_context>

<pallas_src>
import math

import jax
import jax.numpy as jnp
from jax.experimental import pallas as pl
from jax.experimental.pallas import tpu as pltpu

C_IN = 3
C_FEAT = 32
HIDDEN = 32
NUM_ANCHORS = 3
NUM_CLASSES = 5
PRE_NMS_TOPK = 8
IMAGE_SIZE = 16          # size the "transform" resizes every image to
HEAD_PACK = 128          # lane-dense packed width for head outputs
BACKBONE_K = 9 * C_IN    # 27
BACKBONE_K_PAD = 32 - BACKBONE_K          # pad 27 -> 32
ROI_K = C_FEAT + 4       # 36
ROI_K_PAD = 40 - ROI_K                    # pad 36 -> 40
BBOX_XFORM_CLIP = math.log(1000.0 / 16.0)  # torchvision BoxCoder clamp
BLOCK_M = 256            # rows per grid step for the big matmuls


# ---------------------------------------------------------------------------
# Pallas kernels
# ---------------------------------------------------------------------------
def _matmul_bias_relu_kernel(x_ref, w_ref, b_ref, o_ref):
    # relu(x @ w + b); bf16 operands, f32 accumulation.
    acc = jnp.dot(x_ref[...], w_ref[...], preferred_element_type=jnp.float32)
    o_ref[...] = jnp.maximum(acc + b_ref[...], 0.0)


def _mlp2_kernel(x_ref, w1_ref, b1_ref, w2_ref, b2_ref, o_ref):
    # Fused two-layer head: h = relu(x @ w1 + b1) stays in VMEM/registers,
    # o = h @ w2 + b2 (w2 is the lane-dense packed head weight).
    h = jnp.dot(x_ref[...], w1_ref[...], preferred_element_type=jnp.float32)
    h = jnp.maximum(h + b1_ref[...], 0.0)
    o = jnp.dot(h.astype(jnp.bfloat16), w2_ref[...],
                preferred_element_type=jnp.float32)
    o_ref[...] = o + b2_ref[...]


def _pick_tile(m, block_m):
    if m > block_m and m % block_m == 0:
        return block_m
    return m


def matmul_bias_relu_pallas(x, w, b, block_m=BLOCK_M):
    M, K = x.shape
    _, N = w.shape
    tm = _pick_tile(M, block_m)
    grid = (M // tm,)
    cp = (pltpu.CompilerParams(dimension_semantics=("parallel",))
          if grid[0] > 1 else None)
    return pl.pallas_call(
        _matmul_bias_relu_kernel,
        grid=grid,
        in_specs=[pl.BlockSpec((tm, K), lambda i: (i, 0)),
                  pl.BlockSpec((K, N), lambda i: (0, 0)),
                  pl.BlockSpec((1, N), lambda i: (0, 0))],
        out_specs=pl.BlockSpec((tm, N), lambda i: (i, 0)),
        out_shape=jax.ShapeDtypeStruct((M, N), jnp.float32),
        compiler_params=cp,
    )(x, w, b)


def mlp2_pallas(x, w1, b1, w2, b2, block_m=BLOCK_M):
    M, K = x.shape
    _, H = w1.shape
    _, N = w2.shape
    tm = _pick_tile(M, block_m)
    grid = (M // tm,)
    cp = (pltpu.CompilerParams(dimension_semantics=("parallel",))
          if grid[0] > 1 else None)
    return pl.pallas_call(
        _mlp2_kernel,
        grid=grid,
        in_specs=[pl.BlockSpec((tm, K), lambda i: (i, 0)),
                  pl.BlockSpec((K, H), lambda i: (0, 0)),
                  pl.BlockSpec((1, H), lambda i: (0, 0)),
                  pl.BlockSpec((H, N), lambda i: (0, 0)),
                  pl.BlockSpec((1, N), lambda i: (0, 0))],
        out_specs=pl.BlockSpec((tm, N), lambda i: (i, 0)),
        out_shape=jax.ShapeDtypeStruct((M, N), jnp.float32),
        compiler_params=cp,
    )(x, w1, b1, w2, b2)


# ---------------------------------------------------------------------------
# Glue: im2col, anchors, box decoding
# ---------------------------------------------------------------------------
def _im2col_3x3(x):
    # TODO(synk): at realistic resolutions move im2col in-kernel (halo-tiled
    # DMA + shifted VMEM reads) to avoid the 9x patch-matrix HBM round trip;
    # at 16x16 the slab is <1 MB so wrapper im2col is kept.
    N, H, W, C = x.shape
    xp = jnp.pad(x, ((0, 0), (1, 1), (1, 1), (0, 0)))
    cols = [xp[:, dy:dy + H, dx:dx + W, :] for dy in range(3) for dx in range(3)]
    patches = jnp.concatenate(cols, axis=-1)  # (N, H, W, 9*C)
    return patches.reshape(N * H * W, 9 * C)


def generate_anchors(H, W, sizes=(4.0, 8.0, 16.0)):
    ys, xs = jnp.meshgrid(jnp.arange(H, dtype=jnp.float32) + 0.5,
                          jnp.arange(W, dtype=jnp.float32) + 0.5, indexing="ij")
    centers = jnp.stack([xs, ys], axis=-1).reshape(-1, 2)  # (H*W, 2) (cx, cy)
    per_size = []
    for s in sizes:
        half = s / 2.0
        per_size.append(jnp.concatenate([centers - half, centers + half], axis=-1))
    return jnp.stack(per_size, axis=1).reshape(-1, 4)  # (H*W*A, 4)


def decode_boxes(anchors, deltas):
    # Works for any leading batch dims; last dim is (x1, y1, x2, y2).
    widths = anchors[..., 2] - anchors[..., 0]
    heights = anchors[..., 3] - anchors[..., 1]
    cx = anchors[..., 0] + 0.5 * widths
    cy = anchors[..., 1] + 0.5 * heights
    dx, dy = deltas[..., 0], deltas[..., 1]
    dw, dh = deltas[..., 2], deltas[..., 3]
    pcx = dx * widths + cx
    pcy = dy * heights + cy
    pw = jnp.exp(jnp.clip(dw, -BBOX_XFORM_CLIP, BBOX_XFORM_CLIP)) * widths
    ph = jnp.exp(jnp.clip(dh, -BBOX_XFORM_CLIP, BBOX_XFORM_CLIP)) * heights
    return jnp.stack([pcx - 0.5 * pw, pcy - 0.5 * ph,
                      pcx + 0.5 * pw, pcy + 0.5 * ph], axis=-1)


# ---------------------------------------------------------------------------
# Submodules (transform / backbone / rpn / roi_heads)
# ---------------------------------------------------------------------------
def transform_forward(images_nchw):
    # Normalization is folded into the backbone conv weights (per-channel
    # affine commutes with bilinear resize), so only the resize remains here.
    # TODO(synk): torchvision's aspect-preserving min/max-size resize kept as
    # plain-JAX bilinear resize (glue).
    resized = []
    for img in images_nchw:
        x = jnp.transpose(img, (1, 2, 0)).astype(jnp.float32)  # HWC
        x = jax.image.resize(x, (IMAGE_SIZE, IMAGE_SIZE, x.shape[-1]),
                             method="bilinear")
        resized.append(x)
    batch = jnp.stack(resized, axis=0)  # (N, H, W, C)
    image_sizes = [(IMAGE_SIZE, IMAGE_SIZE)] * len(images_nchw)
    return batch, image_sizes


def backbone_forward(prepared, batch):
    N, H, W, _ = batch.shape
    patches = _im2col_3x3(batch)                               # (N*H*W, 27)
    patches = jnp.pad(patches, ((0, 0), (0, BACKBONE_K_PAD)))  # K -> 32
    patches = patches.astype(jnp.bfloat16)
    feat2d = matmul_bias_relu_pallas(
        patches, prepared["backbone_w"], prepared["backbone_b"])  # (N*H*W, 32)
    return feat2d.reshape(N, H, W, C_FEAT)


def rpn_forward(prepared, features, image_sizes):
    N, H, W, _ = features.shape
    A = NUM_ANCHORS
    fpatches = _im2col_3x3(features).astype(jnp.bfloat16)      # (N*H*W, 288)
    # Fused RPN head: conv3x3(+relu) activation stays in VMEM, obj+reg packed
    # into one lane-dense 128-wide output slab.
    head = mlp2_pallas(fpatches,
                       prepared["rpn_conv_w"], prepared["rpn_conv_b"],
                       prepared["rpn_head_w"], prepared["rpn_head_b"])  # (N*H*W, 128)
    # Slice back out in the same (h, w, anchor[, coord]) flattening order used
    # by generate_anchors.
    obj = head[:, :A].reshape(N, H * W * A)
    reg = head[:, A:A + 4 * A].reshape(N, H * W * A, 4)
    anchors = generate_anchors(H, W)                            # (H*W*A, 4)

    _, idx = jax.lax.top_k(obj, PRE_NMS_TOPK)                   # (N, P)
    sel_anchors = anchors[idx]                                  # (N, P, 4)
    sel_deltas = jnp.take_along_axis(reg, idx[..., None], axis=1)  # (N, P, 4)
    boxes = decode_boxes(sel_anchors, sel_deltas)
    h, w = image_sizes[0]  # all images resized to the same size
    clip_hi = jnp.array([w, h, w, h], dtype=jnp.float32)
    proposals = jnp.clip(boxes, 0.0, clip_hi)                   # (N, P, 4)
    # TODO(synk): NMS (data-dependent suppression) has no clean Pallas
    # equivalent; top-k proposals are used directly.
    proposal_losses = {}  # eval mode
    return proposals, proposal_losses


def roi_heads_forward(prepared, features, proposals, image_sizes):
    # TODO(synk): RoIAlign (bilinear per-box sampling) has no clean Pallas
    # equivalent; a global-average-pooled image feature concatenated with
    # normalized box coords is used.
    N, H, W, C = features.shape
    P = proposals.shape[1]
    pooled = jnp.mean(features, axis=(1, 2))                    # (N, C)
    h, w = image_sizes[0]
    norm = jnp.array([w, h, w, h], dtype=jnp.float32)
    roi_feat = jnp.concatenate(
        [jnp.broadcast_to(pooled[:, None, :], (N, P, C)),
         proposals / norm,
         jnp.zeros((N, P, ROI_K_PAD), jnp.float32)],            # K pad 36 -> 40
        axis=-1).reshape(N * P, C + 4 + ROI_K_PAD).astype(jnp.bfloat16)
    # Fused ROI head for the whole batch: hidden stays in VMEM, cls+bbox
    # packed into one lane-dense output.
    head = mlp2_pallas(roi_feat,
                       prepared["box_fc_w"], prepared["box_fc_b"],
                       prepared["roi_head_w"], prepared["roi_head_b"])  # (N*P, 128)
    cls_logits = head[:, :NUM_CLASSES].reshape(N, P, NUM_CLASSES)
    box_deltas = head[:, NUM_CLASSES:NUM_CLASSES + 4 * NUM_CLASSES]
    box_deltas = box_deltas.reshape(N, P, NUM_CLASSES, 4)

    probs = jax.nn.softmax(cls_logits, axis=-1)
    labels = jnp.argmax(probs, axis=-1)                         # (N, P)
    scores = jnp.max(probs, axis=-1)                            # (N, P)
    sel = jnp.take_along_axis(box_deltas, labels[..., None, None],
                              axis=2)[..., 0, :]                # (N, P, 4)
    final_boxes = jnp.clip(decode_boxes(proposals, sel), 0.0, norm)
    detections = {"boxes": final_boxes, "scores": scores, "labels": labels}
    detector_losses = {}
    return detections, detector_losses


def transform_postprocess(detections, image_sizes, original_image_sizes):
    # resize_boxes folded into a single batched multiply (no standalone kernel).
    ratios = jnp.array(
        [[float(o[1]) / float(i[1]), float(o[0]) / float(i[0]),
          float(o[1]) / float(i[1]), float(o[0]) / float(i[0])]
         for i, o in zip(image_sizes, original_image_sizes)],
        dtype=jnp.float32)                                       # (N, 4)
    boxes = detections["boxes"] * ratios[:, None, :]             # (N, P, 4)
    out = []
    for n in range(boxes.shape[0]):
        out.append({"boxes": boxes[n],
                    "scores": detections["scores"][n],
                    "labels": detections["labels"][n]})
    return out


# ---------------------------------------------------------------------------
# GeneralizedRCNN forward (eval mode)
# ---------------------------------------------------------------------------
def generalized_rcnn_forward(prepared, images_nchw, targets=None):
    # TODO(synk): training-mode target assertions / degenerate-box fixup /
    # losses are data-dependent Python control flow on targets and are not
    # reproduced (eval mode).
    original_image_sizes = [(int(img.shape[-2]), int(img.shape[-1]))
                            for img in images_nchw]
    batch, image_sizes = transform_forward(images_nchw)
    features = backbone_forward(prepared, batch)
    proposals, proposal_losses = rpn_forward(prepared, features, image_sizes)
    detections_b, detector_losses = roi_heads_forward(
        prepared, features, proposals, image_sizes)
    detections = transform_postprocess(detections_b, image_sizes,
                                       original_image_sizes)
    losses = {}
    losses.update(proposal_losses)
    losses.update(detector_losses)
    # eager_outputs: eval mode returns detections
    return detections


# ---------------------------------------------------------------------------
# Parameters
# ---------------------------------------------------------------------------
def init_params(key):
    ks = jax.random.split(key, 8)

    def w(k, shape, scale=0.1):
        return (scale * jax.random.normal(k, shape)).astype(jnp.float32)

    return {
        "backbone_w": w(ks[0], (9 * C_IN, C_FEAT)),
        "backbone_b": jnp.zeros((C_FEAT,), jnp.float32),
        "rpn_conv_w": w(ks[1], (9 * C_FEAT, C_FEAT)),
        "rpn_conv_b": jnp.zeros((C_FEAT,), jnp.float32),
        "rpn_obj_w": w(ks[2], (C_FEAT, NUM_ANCHORS)),
        "rpn_obj_b": jnp.zeros((NUM_ANCHORS,), jnp.float32),
        "rpn_reg_w": w(ks[3], (C_FEAT, NUM_ANCHORS * 4), scale=0.02),
        "rpn_reg_b": jnp.zeros((NUM_ANCHORS * 4,), jnp.float32),
        "box_fc_w": w(ks[4], (C_FEAT + 4, HIDDEN)),
        "box_fc_b": jnp.zeros((HIDDEN,), jnp.float32),
        "cls_w": w(ks[5], (HIDDEN, NUM_CLASSES)),
        "cls_b": jnp.zeros((NUM_CLASSES,), jnp.float32),
        "bbox_w": w(ks[6], (HIDDEN, NUM_CLASSES * 4), scale=0.02),
        "bbox_b": jnp.zeros((NUM_CLASSES * 4,), jnp.float32),
        "img_mean": jnp.array([0.485, 0.456, 0.406], jnp.float32),
        "img_std": jnp.array([0.229, 0.224, 0.225], jnp.float32),
    }


def prepare_params(p):
    """One-time weight prep: fold normalization into the backbone conv, pack
    small-N head weights into lane-dense 128-wide slabs, pad K dims to
    multiples of 8 and cast matmul weights to bf16 (biases stay f32)."""
    mean, std = p["img_mean"], p["img_std"]
    # (x - mean)/std @ W == x @ (W / std_rows) + (b - (mean/std)_rows @ W)
    inv_std_rows = jnp.tile(1.0 / std, 9)[:, None]               # (27, 1)
    wb_fold = p["backbone_w"] * inv_std_rows                     # (27, 32)
    bb_fold = p["backbone_b"] - jnp.tile(mean / std, 9) @ p["backbone_w"]
    wb_fold = jnp.pad(wb_fold, ((0, BACKBONE_K_PAD), (0, 0)))    # K 27 -> 32

    # Packed RPN head: [obj(3) | reg(12) | zeros] -> 128 lanes.
    rpn_head_w = jnp.concatenate([p["rpn_obj_w"], p["rpn_reg_w"]], axis=1)
    rpn_head_w = jnp.pad(rpn_head_w,
                         ((0, 0), (0, HEAD_PACK - rpn_head_w.shape[1])))
    rpn_head_b = jnp.concatenate([p["rpn_obj_b"], p["rpn_reg_b"]])
    rpn_head_b = jnp.pad(rpn_head_b, (0, HEAD_PACK - rpn_head_b.shape[0]))

    # Packed ROI head: [cls(5) | bbox(20) | zeros] -> 128 lanes; K 36 -> 40.
    box_fc_w = jnp.pad(p["box_fc_w"], ((0, ROI_K_PAD), (0, 0)))
    roi_head_w = jnp.concatenate([p["cls_w"], p["bbox_w"]], axis=1)
    roi_head_w = jnp.pad(roi_head_w,
                         ((0, 0), (0, HEAD_PACK - roi_head_w.shape[1])))
    roi_head_b = jnp.concatenate([p["cls_b"], p["bbox_b"]])
    roi_head_b = jnp.pad(roi_head_b, (0, HEAD_PACK - roi_head_b.shape[0]))

    return {
        "backbone_w": wb_fold.astype(jnp.bfloat16),
        "backbone_b": bb_fold.reshape(1, -1).astype(jnp.float32),
        "rpn_conv_w": p["rpn_conv_w"].astype(jnp.bfloat16),
        "rpn_conv_b": p["rpn_conv_b"].reshape(1, -1).astype(jnp.float32),
        "rpn_head_w": rpn_head_w.astype(jnp.bfloat16),
        "rpn_head_b": rpn_head_b.reshape(1, -1).astype(jnp.float32),
        "box_fc_w": box_fc_w.astype(jnp.bfloat16),
        "box_fc_b": p["box_fc_b"].reshape(1, -1).astype(jnp.float32),
        "roi_head_w": roi_head_w.astype(jnp.bfloat16),
        "roi_head_b": roi_head_b.reshape(1, -1).astype(jnp.float32),
    }


if __name__ == "__main__":
    key = jax.random.PRNGKey(0)
    pkey, i1, i2 = jax.random.split(key, 3)
    params = init_params(pkey)
    prepared = prepare_params(params)
    # list of NCHW images (as in the PyTorch forward signature)
    images = [
        jax.random.uniform(i1, (3, 20, 20), jnp.float32),
        jax.random.uniform(i2, (3, 20, 20), jnp.float32),
    ]
    detections = generalized_rcnn_forward(prepared, images)
    detections = jax.block_until_ready(detections)
    assert len(detections) == 2
    assert detections[0]["boxes"].shape == (PRE_NMS_TOPK, 4)
    assert detections[0]["scores"].shape == (PRE_NMS_TOPK,)
    assert detections[0]["labels"].shape == (PRE_NMS_TOPK,)
    print("KERNEL_OK")
</pallas_src>

<mosaic_0001>
module attributes {stable_mosaic.version = 11 : i64} {
  func.func @_matmul_bias_relu_kernel(%arg0: i32, %arg1: memref<256x32xbf16, #tpu.memory_space<vmem>>, %arg2: memref<32x32xbf16, #tpu.memory_space<vmem>>, %arg3: memref<1x32xf32, #tpu.memory_space<vmem>>, %arg4: memref<256x32xf32, #tpu.memory_space<vmem>>) attributes {dimension_semantics = [#tpu.dimension_semantics<parallel>], iteration_bounds = array<i64: 2>, scalar_prefetch = 0 : i64, scratch_operands = 0 : i64, tpu.core_type = #tpu.core_type<tc>, window_params = [{transform_indices = @transform_0, window_bounds = array<i64: 256, 32>}, {pipeline_mode = #tpu.pipeline_mode<synchronous>, transform_indices = @transform_1, window_bounds = array<i64: 32, 32>}, {pipeline_mode = #tpu.pipeline_mode<synchronous>, transform_indices = @transform_2, window_bounds = array<i64: 1, 32>}, {transform_indices = @transform_3, window_bounds = array<i64: 256, 32>}]} {
    %c0 = arith.constant 0 : index
    %c0_0 = arith.constant 0 : index
    %0 = vector.load %arg1[%c0, %c0_0] : memref<256x32xbf16, #tpu.memory_space<vmem>>, vector<256x32xbf16>
    %c0_1 = arith.constant 0 : index
    %c0_2 = arith.constant 0 : index
    %1 = vector.load %arg2[%c0_1, %c0_2] : memref<32x32xbf16, #tpu.memory_space<vmem>>, vector<32x32xbf16>
    %cst = arith.constant dense<0.000000e+00> : vector<256x32xf32>
    %2 = tpu.matmul %0, %1, %cst {dimension_numbers = #tpu.dot_dimension_numbers<[1], [0], [0], [1], [0, 0, 1, 1], [], []>} : vector<256x32xbf16>, vector<32x32xbf16>, vector<256x32xf32> -> vector<256x32xf32>
    %c0_3 = arith.constant 0 : index
    %c0_4 = arith.constant 0 : index
    %3 = vector.load %arg3[%c0_3, %c0_4] : memref<1x32xf32, #tpu.memory_space<vmem>>, vector<1x32xf32>
    %4 = vector.broadcast %3 : vector<1x32xf32> to vector<256x32xf32>
    %5 = arith.addf %2, %4 : vector<256x32xf32>
    %cst_5 = arith.constant 0.000000e+00 : f32
    %6 = vector.broadcast %cst_5 : f32 to vector<256x32xf32>
    %7 = arith.maximumf %5, %6 : vector<256x32xf32>
    %c0_6 = arith.constant 0 : index
    %c0_7 = arith.constant 0 : index
    %8 = vector.load %arg4[%c0_6, %c0_7] : memref<256x32xf32, #tpu.memory_space<vmem>>, vector<256x32xf32>
    tpu.vector_store %arg4[%c0_6, %c0_7], %7 {strides = array<i32>} : memref<256x32xf32, #tpu.memory_space<vmem>>, vector<256x32xf32>,
    return
  }
  func.func @transform_0(%arg0: i32) -> (i32, i32) {
    %c0_i32 = arith.constant 0 : i32
    %c0_i32_0 = arith.constant 0 : i32
    return %arg0, %c0_i32 : i32, i32
  }
  func.func @transform_1(%arg0: i32) -> (i32, i32) {
    %c0_i32 = arith.constant 0 : i32
    %c0_i32_0 = arith.constant 0 : i32
    %c0_i32_1 = arith.constant 0 : i32
    return %c0_i32, %c0_i32_0 : i32, i32
  }
  func.func @transform_2(%arg0: i32) -> (i32, i32) {
    %c0_i32 = arith.constant 0 : i32
    %c0_i32_0 = arith.constant 0 : i32
    %c0_i32_1 = arith.constant 0 : i32
    return %c0_i32, %c0_i32_0 : i32, i32
  }
  func.func @transform_3(%arg0: i32) -> (i32, i32) {
    %c0_i32 = arith.constant 0 : i32
    %c0_i32_0 = arith.constant 0 : i32
    return %arg0, %c0_i32 : i32, i32
  }
}

</mosaic_0001>

<llo_original>
// kernel: tpu_custom_call.1
$region0: #{tpu_custom_call.1}
  #allocation0 [shape = 'u32[]', space=smem, size = 0x4, offset = 0x4, fixed_abs, tag = 'smem constant byte address 0x4 - core index']
  #allocation1 [shape = 'u32[144,128]{1,0:T(1,128)}', space=vmem, size = 0x12000, scoped, tag = 'internal scratch']
  %s0 = inlined_call_operand.vmem [shape: bf16[512,32], index: 0, kind: input, shape index: {}]
  %s1 = inlined_call_operand.vmem [shape: bf16[32,32], index: 1, kind: input, shape index: {}]
  %s2 = inlined_call_operand.vmem [shape: f32[1,32], index: 2, kind: input, shape index: {}]
  %s3 = inlined_call_operand.vmem [shape: f32[512,32], index: 3, kind: output, shape index: {}]
  %s4 = sld [smem:[#allocation0]]
  $region45: #{tpu_custom_call.1} parent=0
    _
  %s6 = ssub.s32 1, %s4
  %s7 = scalar_select 0, %s6, %s4
  loop: start=0, step=1, limit=4
  $region2: #{tpu_custom_call.1} parent=0 // loop_pre_header
    _
  $region3: #{tpu_custom_call.1} parent=0 // loop_header
    %s9 = sphi 0, %s13
    %p10 = scmp.ge.s32.totalorder %s9, 4
    %s19 = sphi 0, %s21
    %s22 = sphi 0, %s19
    %s23 = sphi 0, %s22
    %s39 = sphi 0, %s23
    %s43 = sphi 0, %s43
    %s45 = sphi 0, %s43
    %s46 = sphi 0, %s45
    %s60 = sphi 0, %s46
    %s64 = sphi 0, %s64
    %s66 = sphi 0, %s64
    %s67 = sphi 0, %s66
    %s81 = sphi 0, %s67
    %s87 = sphi 0, %s89
    %s90 = sphi 0, %s87
    %s91 = sphi 0, %s90
    %s107 = sphi 0, %s91
  $region4: #{tpu_custom_call.1} parent=0 // loop_header_branch
    %12 = sbr.rel (%p10) target = $region8
  $region5: #{tpu_custom_call.1} parent=0 // loop_body
    %s14 = ssub.s32 %s9, 1
    %s15 = ssub.s32 %s9, 2
    %s16 = sadd.s32 %s9, 1
    %s17 = ssub.s32 %s9, %s16
    %p18 = scmp.eq.s32.totalorder %s17, 0
    %s20 = sadd.s32 %s19, 1
    %s21 = scalar_select %p18, %s19, %s20
    %p24 = pneg %p18
    %p25 = scmp.eq.s32.totalorder %s9, 1
    %p26 = por %p24, %p25
    %p27 = scmp.ne.s32.totalorder %s19, %s22
    %p28 = scmp.eq.s32.totalorder %s9, 0
    %p29 = por %p27, %p28
    %p30 = scmp.ne.s32.totalorder %s19, %s22
    %p31 = scmp.eq.s32.totalorder %s14, 1
    %p32 = por %p30, %p31
    %p33 = scmp.ne.s32.totalorder %s22, %s23
    %p34 = scmp.eq.s32.totalorder %s14, 0
    %p35 = por %p33, %p34
    %p36 = scmp.ne.s32.totalorder %s22, %s23
    %p37 = scmp.eq.s32.totalorder %s15, 1
    %p38 = por %p36, %p37
    %p40 = scmp.ne.s32.totalorder %s23, %s39
    %p41 = scmp.eq.s32.totalorder %s15, 0
    %p42 = por %p40, %p41
    %s44 = sadd.s32 %s43, 1
    %p47 = scmp.eq.s32.totalorder %s9, 1
    %p48 = scmp.ne.s32.totalorder %s43, %s45
    %p49 = scmp.eq.s32.totalorder %s9, 0
    %p50 = por %p48, %p49
    %p51 = scmp.ne.s32.totalorder %s43, %s45
    %p52 = scmp.eq.s32.totalorder %s14, 1
    %p53 = por %p51, %p52
    %p54 = scmp.ne.s32.totalorder %s45, %s46
    %p55 = scmp.eq.s32.totalorder %s14, 0
    %p56 = por %p54, %p55
    %p57 = scmp.ne.s32.totalorder %s45, %s46
    %p58 = scmp.eq.s32.totalorder %s15, 1
    %p59 = por %p57, %p58
    %p61 = scmp.ne.s32.totalorder %s46, %s60
    %p62 = scmp.eq.s32.totalorder %s15, 0
    %p63 = por %p61, %p62
    %s65 = sadd.s32 %s64, 1
    %p68 = scmp.eq.s32.totalorder %s9, 1
    %p69 = scmp.ne.s32.totalorder %s64, %s66
    %p70 = scmp.eq.s32.totalorder %s9, 0
    %p71 = por %p69, %p70
    %p72 = scmp.ne.s32.totalorder %s64, %s66
    %p73 = scmp.eq.s32.totalorder %s14, 1
    %p74 = por %p72, %p73
    %p75 = scmp.ne.s32.totalorder %s66, %s67
    %p76 = scmp.eq.s32.totalorder %s14, 0
    %p77 = por %p75, %p76
    %p78 = scmp.ne.s32.totalorder %s66, %s67
    %p79 = scmp.eq.s32.totalorder %s15, 1
    %p80 = por %p78, %p79
    %p82 = scmp.ne.s32.totalorder %s67, %s81
    %p83 = scmp.eq.s32.totalorder %s15, 0
    %p84 = por %p82, %p83
    %s85 = ssub.s32 %s9, %s16
    %p86 = scmp.eq.s32.totalorder %s85, 0
    %s88 = sadd.s32 %s87, 1
    %s89 = scalar_select %p86, %s87, %s88
    %p92 = pneg %p86
    %p93 = scmp.eq.s32.totalorder %s9, 1
    %p94 = por %p92, %p93
    %p95 = scmp.ne.s32.totalorder %s87, %s90
    %p96 = scmp.eq.s32.totalorder %s9, 0
    %p97 = por %p95, %p96
    %p98 = scmp.ne.s32.totalorder %s87, %s90
    %p99 = scmp.eq.s32.totalorder %s14, 1
    %p100 = por %p98, %p99
    %p101 = scmp.ne.s32.totalorder %s90, %s91
    %p102 = scmp.eq.s32.totalorder %s14, 0
    %p103 = por %p101, %p102
    %p104 = scmp.ne.s32.totalorder %s90, %s91
    %p105 = scmp.eq.s32.totalorder %s15, 1
    %p106 = por %p104, %p105
    %p108 = scmp.ne.s32.totalorder %s91, %s107
    %p109 = scmp.eq.s32.totalorder %s15, 0
    %p110 = por %p108, %p109
    %p111 = scmp.le.s32.totalorder 1, %s9
    %p112 = scmp.lt.s32.totalorder %s9, 3
    %p113 = pnand %p111, %p112
    %p114 = pneg %p113
    // Predicated region
    $region9: #{tpu_custom_call.1} parent=5 // pred_check
      _
    $region10: #{tpu_custom_call.1} parent=5 // pred_check_branch
      %116 = sbr.rel (%p113) target = $region12
    $region11: #{tpu_custom_call.1} parent=5 // pred_region
      %s117 = ssub.s32 %s9, 1
      // Predicated region
      $region13: #{tpu_custom_call.1} parent=11 // pred_check
        %p118 = pneg %p56
      $region14: #{tpu_custom_call.1} parent=11 // pred_check_branch
        %120 = sbr.rel (%p118) target = $region16
      $region15: #{tpu_custom_call.1} parent=11 // pred_region
        _
      $region16: #{tpu_custom_call.1} parent=11 // pred_fallthru
        _
      // Predicated region
      $region17: #{tpu_custom_call.1} parent=11 // pred_check
        %p121 = pneg %p77
      $region18: #{tpu_custom_call.1} parent=11 // pred_check_branch
        %123 = sbr.rel (%p121) target = $region20
      $region19: #{tpu_custom_call.1} parent=11 // pred_region
        _
      $region20: #{tpu_custom_call.1} parent=11 // pred_fallthru
        _
    $region12: #{tpu_custom_call.1} parent=5 // pred_fallthru
      _
    %p124 = scmp.lt.s32.totalorder %s9, 2
    // Predicated region
    $region21: #{tpu_custom_call.1} parent=5 // pred_check
      %p125 = pneg %p124
    $region22: #{tpu_custom_call.1} parent=5 // pred_check_branch
      %127 = sbr.rel (%p125) target = $region24
    $region23: #{tpu_custom_call.1} parent=5 // pred_region
      // Predicated region
      $region25: #{tpu_custom_call.1} parent=23 // pred_check
        %p128 = pneg %p29
      $region26: #{tpu_custom_call.1} parent=23 // pred_check_branch
        %130 = sbr.rel (%p128) target = $region28
      $region27: #{tpu_custom_call.1} parent=23 // pred_region
        %s131 = smul.u32 32, %s9
        %p132 = scmp.lt.s32.totalorder %s131, 63
        %s133 = scalar_select %p132, %s131, 63
        %s134 = smul.addr %s133, 4
        %s135 = scalar_lea.vmem %s0, %s134
        %s136 = smul.u32 32, %s9
      $region28: #{tpu_custom_call.1} parent=23 // pred_fallthru
        _
    $region24: #{tpu_custom_call.1} parent=5 // pred_fallthru
      _
    %p137 = scmp.le.s32.totalorder 1, %s9
    %p138 = scmp.lt.s32.totalorder %s9, 3
    %p139 = pnand %p137, %p138
    %p140 = pneg %p139
    // Predicated region
    $region29: #{tpu_custom_call.1} parent=5 // pred_check
      _
    $region30: #{tpu_custom_call.1} parent=5 // pred_check_branch
      %142 = sbr.rel (%p139) target = $region32
    $region31: #{tpu_custom_call.1} parent=5 // pred_region
      %s143 = ssub.s32 %s9, 1
      %s144 = smul.u32 32, %s14
      %p145 = scmp.lt.s32.totalorder %s144, 63
      %s146 = scalar_select %p145, %s144, 63
      %s147 = smul.addr %s146, 4
      %s148 = scalar_lea.vmem %s0, %s147
      %p149 = pneg %p35
      %p150 = pneg %p32
      %p151 = pneg %p56
      %p152 = pneg %p53
      %p153 = pneg %p77
      %p154 = pneg %p74
      %p155 = pneg %p103
      %p156 = pneg %p100
      %s157 = smul.u32 32, %s14
      %p158 = scmp.lt.s32.totalorder %s157, 63
      %s159 = scalar_select %p158, %s157, 63
      %s160 = smul.addr %s159, 8
      %s161 = scalar_lea.vmem %s3, %s160
      %s162 = smul.u32 32, %s14
      %p163 = scmp.lt.s32.totalorder %s162, 63
      %s164 = scalar_select %p163, %s162, 63
      %s165 = smul.addr %s164, 4
      %s166 = scalar_lea.vmem %s0, %s165
      %s167 = smul.u32 32, %s14
      %s168 = smul.u32 32, %s14
      %p169 = scmp.lt.s32.totalorder %s168, 63
      %s170 = scalar_select %p169, %s168, 63
      %s171 = smul.addr %s170, 8
      %s172 = scalar_lea.vmem %s3, %s171
      %s173 = smul.u32 32, %s14
      %v175 = vld [vmem:[%s166] sm:$0xf]
      %v176 = vld [vmem:[%s166 + $0x4] sm:$0xf]
      %v177 = vld [vmem:[%s166 + $0x8] sm:$0xf]
      %v178 = vld [vmem:[%s166 + $0xc] sm:$0xf]
      %v179 = vld [vmem:[%s166 + $0x10] sm:$0xf]
      %v180 = vld [vmem:[%s166 + $0x14] sm:$0xf]
      %v181 = vld [vmem:[%s166 + $0x18] sm:$0xf]
      %v182 = vld [vmem:[%s166 + $0x1c] sm:$0xf]
      %v183 = vld [vmem:[%s166 + $0x20] sm:$0xf]
      %v184 = vld [vmem:[%s166 + $0x24] sm:$0xf]
      %v185 = vld [vmem:[%s166 + $0x28] sm:$0xf]
      %v186 = vld [vmem:[%s166 + $0x2c] sm:$0xf]
      %v187 = vld [vmem:[%s166 + $0x30] sm:$0xf]
      %v188 = vld [vmem:[%s166 + $0x34] sm:$0xf]
      %v189 = vld [vmem:[%s166 + $0x38] sm:$0xf]
      %v190 = vld [vmem:[%s166 + $0x3c] sm:$0xf]
      %v191 = vld [vmem:[%s166 + $0x40] sm:$0xf]
      %v192 = vld [vmem:[%s166 + $0x44] sm:$0xf]
      %v193 = vld [vmem:[%s166 + $0x48] sm:$0xf]
      %v194 = vld [vmem:[%s166 + $0x4c] sm:$0xf]
      %v195 = vld [vmem:[%s166 + $0x50] sm:$0xf]
      %v196 = vld [vmem:[%s166 + $0x54] sm:$0xf]
      %v197 = vld [vmem:[%s166 + $0x58] sm:$0xf]
      %v198 = vld [vmem:[%s166 + $0x5c] sm:$0xf]
      %v199 = vld [vmem:[%s166 + $0x60] sm:$0xf]
      %v200 = vld [vmem:[%s166 + $0x64] sm:$0xf]
      %v201 = vld [vmem:[%s166 + $0x68] sm:$0xf]
      %v202 = vld [vmem:[%s166 + $0x6c] sm:$0xf]
      %v203 = vld [vmem:[%s166 + $0x70] sm:$0xf]
      %v204 = vld [vmem:[%s166 + $0x74] sm:$0xf]
      %v205 = vld [vmem:[%s166 + $0x78] sm:$0xf]
      %v206 = vld [vmem:[%s166 + $0x7c] sm:$0xf]
      %v207 = vld [vmem:[%s1] sm:$0xf]
      %v208 = vld [vmem:[%s1 + $0x4] sm:$0xf]
      %v209 = vld [vmem:[%s1 + $0x8] sm:$0xf]
      %v210 = vld [vmem:[%s1 + $0xc] sm:$0xf]
      %v211 = vld [vmem:[%s2] sm:$0x1]
      %v213 = vlaneseq
      %v214 = vshrl.u32 %v213, 7
      %v215 = vsub.s32 0, %v214
      %v216 = vrot.slane %v211, %v215
      %v250 = vunpack.c.l.b16 %v175
      %v251 = vunpack.c.l.b16 %v176
      %v252 = vunpack.c.l.b16 %v177
      %v253 = vunpack.c.l.b16 %v178
      %v254 = vunpack.c.l.b16 %v179
      %v255 = vunpack.c.l.b16 %v180
      %v256 = vunpack.c.l.b16 %v181
      %v257 = vunpack.c.l.b16 %v182
      %v258 = vunpack.c.l.b16 %v183
      %v259 = vunpack.c.l.b16 %v184
      %v260 = vunpack.c.l.b16 %v185
      %v261 = vunpack.c.l.b16 %v186
      %v262 = vunpack.c.l.b16 %v187
      %v263 = vunpack.c.l.b16 %v188
      %v264 = vunpack.c.l.b16 %v189
      %v265 = vunpack.c.l.b16 %v190
      %v266 = vunpack.c.l.b16 %v191
      %v267 = vunpack.c.l.b16 %v192
      %v268 = vunpack.c.l.b16 %v193
      %v269 = vunpack.c.l.b16 %v194
      %v270 = vunpack.c.l.b16 %v195
      %v271 = vunpack.c.l.b16 %v196
      %v272 = vunpack.c.l.b16 %v197
      %v273 = vunpack.c.l.b16 %v198
      %v274 = vunpack.c.l.b16 %v199
      %v275 = vunpack.c.l.b16 %v200
      %v276 = vunpack.c.l.b16 %v201
      %v277 = vunpack.c.l.b16 %v202
      %v278 = vunpack.c.l.b16 %v203
      %v279 = vunpack.c.l.b16 %v204
      %v280 = vunpack.c.l.b16 %v205
      %v281 = vunpack.c.l.b16 %v206
      %v282 = vpack.c.b16 %v251, %v250
      %v283 = vpack.c.b16 %v253, %v252
      %v284 = vpack.c.b16 %v255, %v254
      %v285 = vpack.c.b16 %v257, %v256
      %v286 = vpack.c.b16 %v259, %v258
      %v287 = vpack.c.b16 %v261, %v260
      %v288 = vpack.c.b16 %v263, %v262
      %v289 = vpack.c.b16 %v265, %v264
      %v290 = vpack.c.b16 %v267, %v266
      %v291 = vpack.c.b16 %v269, %v268
      %v292 = vpack.c.b16 %v271, %v270
      %v293 = vpack.c.b16 %v273, %v272
      %v294 = vpack.c.b16 %v275, %v274
      %v295 = vpack.c.b16 %v277, %v276
      %v296 = vpack.c.b16 %v279, %v278
      %v297 = vpack.c.b16 %v281, %v280
      %v302 = vunpack.c.l.b16 %v207
      %v303 = vunpack.c.l.b16 %v208
      %v304 = vunpack.c.l.b16 %v209
      %v305 = vunpack.c.l.b16 %v210
      %v306 = vpack.c.b16 %v303, %v302
      %v307 = vpack.c.b16 %v305, %v304
      %vm310 = vcmask 261120
      %v312 = vsel %vm310, %v282, 0
      %v315 = vsel %vm310, %v283, 0
      %v318 = vsel %vm310, %v284, 0
      %v321 = vsel %vm310, %v285, 0
      %v324 = vsel %vm310, %v286, 0
      %v327 = vsel %vm310, %v287, 0
      %v330 = vsel %vm310, %v288, 0
      %v333 = vsel %vm310, %v289, 0
      %v336 = vsel %vm310, %v290, 0
      %v339 = vsel %vm310, %v291, 0
      %v342 = vsel %vm310, %v292, 0
      %v345 = vsel %vm310, %v293, 0
      %v348 = vsel %vm310, %v294, 0
      %v351 = vsel %vm310, %v295, 0
      %v354 = vsel %vm310, %v296, 0
      %v357 = vsel %vm310, %v297, 0
      %359 = vmatprep.subr.bf16.mxu0 0
      %360 = vmatpush1.bf16.msra.mxu0 %v306
      %361 = vmatprep.subr.bf16.mxu0 0
      %362 = vmatpush1.bf16.msra.mxu0 %v307
      %363 = vmatprep.subr.bf16.mxu0 0
      %364 = vmatpush1.bf16.msra.mxu0 0
      %365 = vmatprep.subr.bf16.mxu0 0
      %366 = vmatpush1.bf16.msra.mxu0 0
      %367 = vmatprep.subr.bf16.mxu0 0
      %368 = vmatpush1.bf16.msra.mxu0 0
      %369 = vmatprep.subr.bf16.mxu0 0
      %370 = vmatpush1.bf16.msra.mxu0 0
      %371 = vmatprep.subr.bf16.mxu0 0
      %372 = vmatpush1.bf16.msra.mxu0 0
      %373 = vmatprep.subr.bf16.mxu0 0
      %374 = vmatpush1.bf16.msra.mxu0 0
      %375 = vmatprep.subr.bf16.mxu0 0
      %376 = vmatpush1.bf16.msra.mxu0 0
      %377 = vmatprep.subr.bf16.mxu0 0
      %378 = vmatpush1.bf16.msra.mxu0 0
      %379 = vmatprep.subr.bf16.mxu0 0
      %380 = vmatpush1.bf16.msra.mxu0 0
      %381 = vmatprep.subr.bf16.mxu0 0
      %382 = vmatpush1.bf16.msra.mxu0 0
      %383 = vmatprep.subr.bf16.mxu0 0
      %384 = vmatpush1.bf16.msra.mxu0 0
      %385 = vmatprep.subr.bf16.mxu0 0
      %386 = vmatpush1.bf16.msra.mxu0 0
      %387 = vmatprep.subr.bf16.mxu0 0
      %388 = vmatpush1.bf16.msra.mxu0 0
      %389 = vmatprep.subr.bf16.mxu0 0
      %390 = vmatpush1.bf16.msra.mxu0 0
      %391 = vmatprep.mubr.bf16.mxu0 0
      %392 = vmatmul.mubr.bf16.gmra.mrb[0].mxu0 %v312
      %v393 = vpop.f32.mrb[0].mxu0
      %v394 = vadd.f32 %v216, %v393
      %v395 = vpop.f32.mrb[0].mxu0
      %v396 = vpop.f32.mrb[0].mxu0
      %v397 = vadd.f32 %v216, %v396
      %v398 = vpop.f32.mrb[0].mxu0
      %399 = vmatprep.mubr.bf16.mxu0 0
      %400 = vmatmul.mubr.bf16.gmra.mrb[0].mxu0 %v315
      %v401 = vpop.f32.mrb[0].mxu0
      %v402 = vadd.f32 %v216, %v401
      %v403 = vpop.f32.mrb[0].mxu0
      %v404 = vpop.f32.mrb[0].mxu0
      %v405 = vadd.f32 %v216, %v404
      %v406 = vpop.f32.mrb[0].mxu0
      %407 = vmatprep.mubr.bf16.mxu0 0
      %408 = vmatmul.mubr.bf16.gmra.mrb[0].mxu0 %v318
      %v409 = vpop.f32.mrb[0].mxu0
      %v410 = vadd.f32 %v216, %v409
      %v411 = vpop.f32.mrb[0].mxu0
      %v412 = vpop.f32.mrb[0].mxu0
      %v413 = vadd.f32 %v216, %v412
      %v414 = vpop.f32.mrb[0].mxu0
      %415 = vmatprep.mubr.bf16.mxu0 0
      %416 = vmatmul.mubr.bf16.gmra.mrb[0].mxu0 %v321
      %v417 = vpop.f32.mrb[0].mxu0
      %v418 = vadd.f32 %v216, %v417
      %v419 = vpop.f32.mrb[0].mxu0
      %v420 = vpop.f32.mrb[0].mxu0
      %v421 = vadd.f32 %v216, %v420
      %v422 = vpop.f32.mrb[0].mxu0
      %423 = vmatprep.mubr.bf16.mxu0 0
      %424 = vmatmul.mubr.bf16.gmra.mrb[0].mxu0 %v324
      %v425 = vpop.f32.mrb[0].mxu0
      %v426 = vadd.f32 %v216, %v425
      %v427 = vpop.f32.mrb[0].mxu0
      %v428 = vpop.f32.mrb[0].mxu0
      %v429 = vadd.f32 %v216, %v428
      %v430 = vpop.f32.mrb[0].mxu0
      %431 = vmatprep.mubr.bf16.mxu0 0
      %432 = vmatmul.mubr.bf16.gmra.mrb[0].mxu0 %v327
      %v433 = vpop.f32.mrb[0].mxu0
      %v434 = vadd.f32 %v216, %v433
      %v435 = vpop.f32.mrb[0].mxu0
      %v436 = vpop.f32.mrb[0].mxu0
      %v437 = vadd.f32 %v216, %v436
      %v438 = vpop.f32.mrb[0].mxu0
      %439 = vmatprep.mubr.bf16.mxu0 0
      %440 = vmatmul.mubr.bf16.gmra.mrb[0].mxu0 %v330
      %v441 = vpop.f32.mrb[0].mxu0
      %v442 = vadd.f32 %v216, %v441
      %v443 = vpop.f32.mrb[0].mxu0
      %v444 = vpop.f32.mrb[0].mxu0
      %v445 = vadd.f32 %v216, %v444
      %v446 = vpop.f32.mrb[0].mxu0
      %447 = vmatprep.mubr.bf16.mxu0 0
      %448 = vmatmul.mubr.bf16.gmra.mrb[0].mxu0 %v333
      %v449 = vpop.f32.mrb[0].mxu0
      %v450 = vadd.f32 %v216, %v449
      %v451 = vpop.f32.mrb[0].mxu0
      %v452 = vpop.f32.mrb[0].mxu0
      %v453 = vadd.f32 %v216, %v452
      %v454 = vpop.f32.mrb[0].mxu0
      %455 = vmatprep.mubr.bf16.mxu0 0
      %456 = vmatmul.mubr.bf16.gmra.mrb[0].mxu0 %v336
      %v457 = vpop.f32.mrb[0].mxu0
      %v458 = vadd.f32 %v216, %v457
      %v459 = vpop.f32.mrb[0].mxu0
      %v460 = vpop.f32.mrb[0].mxu0
      %v461 = vadd.f32 %v216, %v460
      %v462 = vpop.f32.mrb[0].mxu0
      %463 = vmatprep.mubr.bf16.mxu0 0
      %464 = vmatmul.mubr.bf16.gmra.mrb[0].mxu0 %v339
      %v465 = vpop.f32.mrb[0].mxu0
      %v466 = vadd.f32 %v216, %v465
      %v467 = vpop.f32.mrb[0].mxu0
      %v468 = vpop.f32.mrb[0].mxu0
      %v469 = vadd.f32 %v216, %v468
      %v470 = vpop.f32.mrb[0].mxu0
      %471 = vmatprep.mubr.bf16.mxu0 0
      %472 = vmatmul.mubr.bf16.gmra.mrb[0].mxu0 %v342
      %v473 = vpop.f32.mrb[0].mxu0
      %v474 = vadd.f32 %v216, %v473
      %v475 = vpop.f32.mrb[0].mxu0
      %v476 = vpop.f32.mrb[0].mxu0
      %v477 = vadd.f32 %v216, %v476
      %v478 = vpop.f32.mrb[0].mxu0
      %479 = vmatprep.mubr.bf16.mxu0 0
      %480 = vmatmul.mubr.bf16.gmra.mrb[0].mxu0 %v345
      %v481 = vpop.f32.mrb[0].mxu0
      %v482 = vadd.f32 %v216, %v481
      %v483 = vpop.f32.mrb[0].mxu0
      %v484 = vpop.f32.mrb[0].mxu0
      %v485 = vadd.f32 %v216, %v484
      %v486 = vpop.f32.mrb[0].mxu0
      %487 = vmatprep.mubr.bf16.mxu0 0
      %488 = vmatmul.mubr.bf16.gmra.mrb[0].mxu0 %v348
      %v489 = vpop.f32.mrb[0].mxu0
      %v490 = vadd.f32 %v216, %v489
      %v491 = vpop.f32.mrb[0].mxu0
      %v492 = vpop.f32.mrb[0].mxu0
      %v493 = vadd.f32 %v216, %v492
      %v494 = vpop.f32.mrb[0].mxu0
      %495 = vmatprep.mubr.bf16.mxu0 0
      %496 = vmatmul.mubr.bf16.gmra.mrb[0].mxu0 %v351
      %v497 = vpop.f32.mrb[0].mxu0
      %v498 = vadd.f32 %v216, %v497
      %v499 = vpop.f32.mrb[0].mxu0
      %v500 = vpop.f32.mrb[0].mxu0
      %v501 = vadd.f32 %v216, %v500
      %v502 = vpop.f32.mrb[0].mxu0
      %503 = vmatprep.mubr.bf16.mxu0 0
      %504 = vmatmul.mubr.bf16.gmra.mrb[0].mxu0 %v354
      %v505 = vpop.f32.mrb[0].mxu0
      %v506 = vadd.f32 %v216, %v505
      %v507 = vpop.f32.mrb[0].mxu0
      %v508 = vpop.f32.mrb[0].mxu0
      %v509 = vadd.f32 %v216, %v508
      %v510 = vpop.f32.mrb[0].mxu0
      %511 = vmatprep.mubr.bf16.mxu0 0
      %512 = vmatmul.mubr.bf16.gmra.mrb[0].mxu0 %v357
      %v513 = vpop.f32.mrb[0].mxu0
      %v514 = vadd.f32 %v216, %v513
      %v515 = vpop.f32.mrb[0].mxu0
      %v516 = vpop.f32.mrb[0].mxu0
      %v517 = vadd.f32 %v216, %v516
      %v518 = vpop.f32.mrb[0].mxu0
      %519 = vdwg.mxu0
      %v520 = vmax.f32 %v394, 0.0
      %v521 = vmax.f32 %v397, 0.0
      %v522 = vmax.f32 %v402, 0.0
      %v523 = vmax.f32 %v405, 0.0
      %v524 = vmax.f32 %v410, 0.0
      %v525 = vmax.f32 %v413, 0.0
      %v526 = vmax.f32 %v418, 0.0
      %v527 = vmax.f32 %v421, 0.0
      %v528 = vmax.f32 %v426, 0.0
      %v529 = vmax.f32 %v429, 0.0
      %v530 = vmax.f32 %v434, 0.0
      %v531 = vmax.f32 %v437, 0.0
      %v532 = vmax.f32 %v442, 0.0
      %v533 = vmax.f32 %v445, 0.0
      %v534 = vmax.f32 %v450, 0.0
      %v535 = vmax.f32 %v453, 0.0
      %v536 = vmax.f32 %v458, 0.0
      %v537 = vmax.f32 %v461, 0.0
      %v538 = vmax.f32 %v466, 0.0
      %v539 = vmax.f32 %v469, 0.0
      %v540 = vmax.f32 %v474, 0.0
      %v541 = vmax.f32 %v477, 0.0
      %v542 = vmax.f32 %v482, 0.0
      %v543 = vmax.f32 %v485, 0.0
      %v544 = vmax.f32 %v490, 0.0
      %v545 = vmax.f32 %v493, 0.0
      %v546 = vmax.f32 %v498, 0.0
      %v547 = vmax.f32 %v501, 0.0
      %v548 = vmax.f32 %v506, 0.0
      %v549 = vmax.f32 %v509, 0.0
      %v550 = vmax.f32 %v514, 0.0
      %v551 = vmax.f32 %v517, 0.0
      %552 = vst.msk [vmem:[%s172] sm:$0xff] %vm310, %v520
      %553 = vst.msk [vmem:[%s172 + $0x8] sm:$0xff] %vm310, %v521
      %554 = vst.msk [vmem:[%s172 + $0x10] sm:$0xff] %vm310, %v522
      %555 = vst.msk [vmem:[%s172 + $0x18] sm:$0xff] %vm310, %v523
      %556 = vst.msk [vmem:[%s172 + $0x20] sm:$0xff] %vm310, %v524
      %557 = vst.msk [vmem:[%s172 + $0x28] sm:$0xff] %vm310, %v525
      %558 = vst.msk [vmem:[%s172 + $0x30] sm:$0xff] %vm310, %v526
      %559 = vst.msk [vmem:[%s172 + $0x38] sm:$0xff] %vm310, %v527
      %560 = vst.msk [vmem:[%s172 + $0x40] sm:$0xff] %vm310, %v528
      %561 = vst.msk [vmem:[%s172 + $0x48] sm:$0xff] %vm310, %v529
      %562 = vst.msk [vmem:[%s172 + $0x50] sm:$0xff] %vm310, %v530
      %563 = vst.msk [vmem:[%s172 + $0x58] sm:$0xff] %vm310, %v531
      %564 = vst.msk [vmem:[%s172 + $0x60] sm:$0xff] %vm310, %v532
      %565 = vst.msk [vmem:[%s172 + $0x68] sm:$0xff] %vm310, %v533
      %566 = vst.msk [vmem:[%s172 + $0x70] sm:$0xff] %vm310, %v534
      %567 = vst.msk [vmem:[%s172 + $0x78] sm:$0xff] %vm310, %v535
      %568 = vst.msk [vmem:[%s172 + $0x80] sm:$0xff] %vm310, %v536
      %569 = vst.msk [vmem:[%s172 + $0x88] sm:$0xff] %vm310, %v537
      %570 = vst.msk [vmem:[%s172 + $0x90] sm:$0xff] %vm310, %v538
      %571 = vst.msk [vmem:[%s172 + $0x98] sm:$0xff] %vm310, %v539
      %572 = vst.msk [vmem:[%s172 + $0xa0] sm:$0xff] %vm310, %v540
      %573 = vst.msk [vmem:[%s172 + $0xa8] sm:$0xff] %vm310, %v541
      %574 = vst.msk [vmem:[%s172 + $0xb0] sm:$0xff] %vm310, %v542
      %575 = vst.msk [vmem:[%s172 + $0xb8] sm:$0xff] %vm310, %v543
      %576 = vst.msk [vmem:[%s172 + $0xc0] sm:$0xff] %vm310, %v544
      %577 = vst.msk [vmem:[%s172 + $0xc8] sm:$0xff] %vm310, %v545
      %578 = vst.msk [vmem:[%s172 + $0xd0] sm:$0xff] %vm310, %v546
      %579 = vst.msk [vmem:[%s172 + $0xd8] sm:$0xff] %vm310, %v547
      %580 = vst.msk [vmem:[%s172 + $0xe0] sm:$0xff] %vm310, %v548
      %581 = vst.msk [vmem:[%s172 + $0xe8] sm:$0xff] %vm310, %v549
      %582 = vst.msk [vmem:[%s172 + $0xf0] sm:$0xff] %vm310, %v550
      %583 = vst.msk [vmem:[%s172 + $0xf8] sm:$0xff] %vm310, %v551
      %s584 = smul.u32 32, %s14
      %p585 = scmp.lt.s32.totalorder %s584, 63
      %s586 = scalar_select %p585, %s584, 63
      %s587 = smul.addr %s586, 8
      %s588 = scalar_lea.vmem %s3, %s587
      // Predicated region
      $region33: #{tpu_custom_call.1} parent=31 // pred_check
        %p589 = pneg %p100
      $region34: #{tpu_custom_call.1} parent=31 // pred_check_branch
        %591 = sbr.rel (%p589) target = $region36
      $region35: #{tpu_custom_call.1} parent=31 // pred_region
        %s592 = smul.u32 32, %s14
      $region36: #{tpu_custom_call.1} parent=31 // pred_fallthru
        _
    $region32: #{tpu_custom_call.1} parent=5 // pred_fallthru
      _
    %p593 = scmp.le.s32.totalorder 2, %s9
    // Predicated region
    $region37: #{tpu_custom_call.1} parent=5 // pred_check
      %p594 = pneg %p593
    $region38: #{tpu_custom_call.1} parent=5 // pred_check_branch
      %596 = sbr.rel (%p594) target = $region40
    $region39: #{tpu_custom_call.1} parent=5 // pred_region
      %s597 = ssub.s32 %s9, 2
      // Predicated region
      $region41: #{tpu_custom_call.1} parent=39 // pred_check
        %p598 = pneg %p106
      $region42: #{tpu_custom_call.1} parent=39 // pred_check_branch
        %600 = sbr.rel (%p598) target = $region44
      $region43: #{tpu_custom_call.1} parent=39 // pred_region
        %s601 = smul.u32 32, %s15
        %p602 = scmp.lt.s32.totalorder %s601, 63
        %s603 = scalar_select %p602, %s601, 63
        %s604 = smul.addr %s603, 8
        %s605 = scalar_lea.vmem %s3, %s604
      $region44: #{tpu_custom_call.1} parent=39 // pred_fallthru
        _
    $region40: #{tpu_custom_call.1} parent=5 // pred_fallthru
      _
  $region6: #{tpu_custom_call.1} parent=0 // loop_footer
    %s13 = sadd.s32 1, %s9
  $region7: #{tpu_custom_call.1} parent=0 // loop_footer_branch
    %8 = sbr.rel target = $region3
  $region8: #{tpu_custom_call.1} parent=0 // loop_exit
    _

</llo_original>
